<compile_context>
chip_gen: v7x
topology: tpu7x:2x2x1
jax: 0.10.0
libtpu: 0.0.40
codegen_flags: <defaults>
</compile_context>

<pallas_src>
import functools

import jax
import jax.numpy as jnp
from jax.experimental import pallas as pl
from jax.experimental.pallas import tpu as pltpu


def mlp_kernel(x_ref, w1_ref, b1_ref, w2_ref, b2_ref, w3r_ref, b3_ref, o_ref):
    # x arrives as f32 straight from HBM (single pass); cast to bf16 on the VPU
    # right before the MXU (accumulation stays f32 via preferred_element_type).
    x = x_ref[...].astype(jnp.bfloat16)                       # (tb, 125)
    h1 = jnp.dot(x, w1_ref[...], preferred_element_type=jnp.float32)
    h1 = jnp.maximum(h1 + b1_ref[...], 0.0)                   # (tb, 256) f32
    h2 = jnp.dot(h1.astype(jnp.bfloat16), w2_ref[...],
                 preferred_element_type=jnp.float32)
    h2 = jnp.maximum(h2 + b2_ref[...], 0.0)                   # (tb, 128) f32
    # Final layer (out_features == 1), emitted lane-dense:
    # (1,128) @ (128,tb) -> (1,tb) row, so stores are full-lane and the
    # writeback DMA is dense (no (tb,1) masked column stores).
    z = jnp.dot(w3r_ref[...], h2.T, preferred_element_type=jnp.float32)
    z = z + b3_ref[0]                                         # scalar bias from SMEM
    o_ref[...] = jax.nn.sigmoid(z).astype(o_ref.dtype)        # (1, tb)


def _pick_batch_tile(batch, tb_max):
    """256-aligned batch tile, capped at tb_max; prefers >= 2 tiles so that
    dimension_semantics=("parallel",) can split tiles across v7x's two TCs."""
    b_aligned = pl.cdiv(batch, 256) * 256
    if b_aligned <= 256:
        return 256
    tb = min(tb_max, b_aligned)
    if pl.cdiv(b_aligned, tb) < 2:
        tb = max(256, pl.cdiv(b_aligned // 2, 256) * 256)
    return tb


@functools.partial(jax.jit, static_argnames=("tb_max",))
def ac_forward(x, params, *, tb_max=2048):
    """Fused AC forward pass: one Pallas kernel, batch-tiled grid."""
    w1, b1, w2, b2, w3, b3 = params
    B, K = x.shape                       # K = 125 (kept unpadded)
    h1_dim = w1.shape[1]                 # 256
    h2_dim = w2.shape[1]                 # 128

    tb = _pick_batch_tile(B, tb_max)
    n_tiles = pl.cdiv(B, tb)
    b_pad = n_tiles * tb
    if b_pad != B:                       # pad batch only when needed (small copy)
        x = jnp.pad(x, ((0, b_pad - B), (0, 0)))

    # Tiny weight casts / reshapes (a few hundred KB at most, done once).
    w1b = w1.astype(jnp.bfloat16)        # (125, 256)
    w2b = w2.astype(jnp.bfloat16)        # (256, 128)
    w3r = w3.reshape(1, h2_dim)          # (1, 128) f32 row
    b3s = b3.reshape(1)                  # (1,) f32 scalar -> SMEM

    flops = 2 * b_pad * (K * h1_dim + h1_dim * h2_dim + h2_dim)
    bytes_accessed = (x.size * 4 + b_pad * 4
                      + (w1b.size + w2b.size) * 2
                      + (b1.size + b2.size + w3r.size + 1) * 4)

    out = pl.pallas_call(
        mlp_kernel,
        out_shape=jax.ShapeDtypeStruct((1, b_pad), jnp.float32),
        grid=(n_tiles,),
        in_specs=[
            pl.BlockSpec((tb, K), lambda i: (i, 0)),          # x tile (pipelined, f32)
            pl.BlockSpec((K, h1_dim), lambda i: (0, 0)),      # w1 (VMEM-resident)
            pl.BlockSpec((1, h1_dim), lambda i: (0, 0)),      # b1
            pl.BlockSpec((h1_dim, h2_dim), lambda i: (0, 0)), # w2
            pl.BlockSpec((1, h2_dim), lambda i: (0, 0)),      # b2
            pl.BlockSpec((1, h2_dim), lambda i: (0, 0)),      # w3 row
            pl.BlockSpec(memory_space=pltpu.MemorySpace.SMEM),  # b3 scalar
        ],
        out_specs=pl.BlockSpec((1, tb), lambda i: (0, i)),    # lane-dense output row
        compiler_params=pltpu.CompilerParams(
            dimension_semantics=("parallel",),                # megacore on v7x
            vmem_limit_bytes=32 * 1024 * 1024,
        ),
        cost_estimate=pl.CostEstimate(
            flops=flops, transcendentals=b_pad, bytes_accessed=bytes_accessed),
    )(x, w1b, b1, w2b, b2, w3r, b3s)

    return out[0, :B].reshape(B, 1)


def init_params(key):
    """Deterministic parameter init matching the layer shapes in AC.__init__."""
    dims = [125, 256, 128, 1]
    ks = jax.random.split(key, 6)
    params = []
    for i in range(3):
        fan_in, fan_out = dims[i], dims[i + 1]
        bound = 1.0 / (fan_in ** 0.5)
        w = jax.random.uniform(ks[2 * i], (fan_in, fan_out), jnp.float32, -bound, bound)
        b = jax.random.uniform(ks[2 * i + 1], (1, fan_out), jnp.float32, -bound, bound)
        params += [w, b]
    return tuple(params)


def ac_reference(x, params):
    w1, b1, w2, b2, w3, b3 = params
    h1 = jnp.maximum(x @ w1 + b1, 0.0)
    h2 = jnp.maximum(h1 @ w2 + b2, 0.0)
    return jax.nn.sigmoid(h2 @ w3 + b3)


if __name__ == "__main__":
    key = jax.random.PRNGKey(0)
    k_x, k_p = jax.random.split(key)

    # Not a multiple of the 256-row tile: exercises batch padding + a 2-step grid
    # (and the >=2-tiles-for-megacore path).
    batch = 300
    x = jax.random.normal(k_x, (batch, 125), dtype=jnp.float32)
    params = init_params(k_p)

    out = jax.block_until_ready(ac_forward(x, params))
    ref = ac_reference(x, params)

    assert out.shape == (batch, 1), out.shape
    # Tolerance accounts for bf16 MXU operands (f32 accumulation) in the two big dots.
    assert jnp.allclose(out, ref, atol=1e-2, rtol=1e-2), "mismatch vs reference"

    print("KERNEL_OK")
</pallas_src>

<mosaic_0001>
module attributes {stable_mosaic.version = 11 : i64} {
  func.func @mlp_kernel(%arg0: i32, %arg1: memref<256x125xf32, #tpu.memory_space<vmem>>, %arg2: memref<125x256xbf16, #tpu.memory_space<vmem>>, %arg3: memref<1x256xf32, #tpu.memory_space<vmem>>, %arg4: memref<256x128xbf16, #tpu.memory_space<vmem>>, %arg5: memref<1x128xf32, #tpu.memory_space<vmem>>, %arg6: memref<1x128xf32, #tpu.memory_space<vmem>>, %arg7: memref<1xf32, #tpu.memory_space<smem>>, %arg8: memref<1x256xf32, #tpu.memory_space<vmem>>) attributes {dimension_semantics = [#tpu.dimension_semantics<parallel>], iteration_bounds = array<i64: 2>, scalar_prefetch = 0 : i64, scratch_operands = 0 : i64, tpu.core_type = #tpu.core_type<tc>, window_params = [{transform_indices = @transform_0, window_bounds = array<i64: 256, 125>}, {pipeline_mode = #tpu.pipeline_mode<synchronous>, transform_indices = @transform_1, window_bounds = array<i64: 125, 256>}, {pipeline_mode = #tpu.pipeline_mode<synchronous>, transform_indices = @transform_2, window_bounds = array<i64: 1, 256>}, {pipeline_mode = #tpu.pipeline_mode<synchronous>, transform_indices = @transform_3, window_bounds = array<i64: 256, 128>}, {pipeline_mode = #tpu.pipeline_mode<synchronous>, transform_indices = @transform_4, window_bounds = array<i64: 1, 128>}, {pipeline_mode = #tpu.pipeline_mode<synchronous>, transform_indices = @transform_5, window_bounds = array<i64: 1, 128>}, {transform_indices = @transform_6, window_bounds = array<i64: 1>}, {transform_indices = @transform_7, window_bounds = array<i64: 1, 256>}]} {
    %c0 = arith.constant 0 : index
    %c0_0 = arith.constant 0 : index
    %0 = vector.load %arg1[%c0, %c0_0] : memref<256x125xf32, #tpu.memory_space<vmem>>, vector<256x125xf32>
    %1 = arith.truncf %0 : vector<256x125xf32> to vector<256x125xbf16>
    %c0_1 = arith.constant 0 : index
    %c0_2 = arith.constant 0 : index
    %2 = vector.load %arg2[%c0_1, %c0_2] : memref<125x256xbf16, #tpu.memory_space<vmem>>, vector<125x256xbf16>
    %cst = arith.constant dense<0.000000e+00> : vector<256x256xf32>
    %3 = tpu.matmul %1, %2, %cst {dimension_numbers = #tpu.dot_dimension_numbers<[1], [0], [0], [1], [0, 0, 1, 1], [], []>} : vector<256x125xbf16>, vector<125x256xbf16>, vector<256x256xf32> -> vector<256x256xf32>
    %c0_3 = arith.constant 0 : index
    %c0_4 = arith.constant 0 : index
    %4 = vector.load %arg3[%c0_3, %c0_4] : memref<1x256xf32, #tpu.memory_space<vmem>>, vector<1x256xf32>
    %5 = vector.broadcast %4 : vector<1x256xf32> to vector<256x256xf32>
    %6 = arith.addf %3, %5 : vector<256x256xf32>
    %cst_5 = arith.constant 0.000000e+00 : f32
    %7 = vector.broadcast %cst_5 : f32 to vector<256x256xf32>
    %8 = arith.maximumf %6, %7 : vector<256x256xf32>
    %9 = arith.truncf %8 : vector<256x256xf32> to vector<256x256xbf16>
    %c0_6 = arith.constant 0 : index
    %c0_7 = arith.constant 0 : index
    %10 = vector.load %arg4[%c0_6, %c0_7] : memref<256x128xbf16, #tpu.memory_space<vmem>>, vector<256x128xbf16>
    %cst_8 = arith.constant dense<0.000000e+00> : vector<256x128xf32>
    %11 = tpu.matmul %9, %10, %cst_8 {dimension_numbers = #tpu.dot_dimension_numbers<[1], [0], [0], [1], [0, 0, 1, 1], [], []>} : vector<256x256xbf16>, vector<256x128xbf16>, vector<256x128xf32> -> vector<256x128xf32>
    %c0_9 = arith.constant 0 : index
    %c0_10 = arith.constant 0 : index
    %12 = vector.load %arg5[%c0_9, %c0_10] : memref<1x128xf32, #tpu.memory_space<vmem>>, vector<1x128xf32>
    %13 = vector.broadcast %12 : vector<1x128xf32> to vector<256x128xf32>
    %14 = arith.addf %11, %13 : vector<256x128xf32>
    %cst_11 = arith.constant 0.000000e+00 : f32
    %15 = vector.broadcast %cst_11 : f32 to vector<256x128xf32>
    %16 = arith.maximumf %14, %15 : vector<256x128xf32>
    %c0_12 = arith.constant 0 : index
    %c0_13 = arith.constant 0 : index
    %17 = vector.load %arg6[%c0_12, %c0_13] : memref<1x128xf32, #tpu.memory_space<vmem>>, vector<1x128xf32>
    %18 = tpu.transpose %16, [1, 0] : vector<256x128xf32> -> vector<128x256xf32>
    %cst_14 = arith.constant dense<0.000000e+00> : vector<1x256xf32>
    %19 = tpu.matmul %17, %18, %cst_14 {dimension_numbers = #tpu.dot_dimension_numbers<[1], [0], [0], [1], [0, 0, 1, 1], [], []>} : vector<1x128xf32>, vector<128x256xf32>, vector<1x256xf32> -> vector<1x256xf32>
    %c0_15 = arith.constant 0 : index
    %20 = memref.load %arg7[%c0_15] : memref<1xf32, #tpu.memory_space<smem>>
    %21 = vector.broadcast %20 : f32 to vector<1x256xf32>
    %22 = arith.addf %19, %21 : vector<1x256xf32>
    %23 = arith.negf %22 : vector<1x256xf32>
    %24 = math.exp %23 : vector<1x256xf32>
    %cst_16 = arith.constant 1.000000e+00 : f32
    %25 = vector.broadcast %cst_16 : f32 to vector<1x256xf32>
    %26 = arith.addf %25, %24 : vector<1x256xf32>
    %27 = arith.divf %25, %26 : vector<1x256xf32>
    %c0_17 = arith.constant 0 : index
    %c0_18 = arith.constant 0 : index
    %28 = vector.load %arg8[%c0_17, %c0_18] : memref<1x256xf32, #tpu.memory_space<vmem>>, vector<1x256xf32>
    tpu.vector_store %arg8[%c0_17, %c0_18], %27 {strides = array<i32>} : memref<1x256xf32, #tpu.memory_space<vmem>>, vector<1x256xf32>,
    return
  }
  func.func @transform_0(%arg0: i32) -> (i32, i32) {
    %c0_i32 = arith.constant 0 : i32
    %c0_i32_0 = arith.constant 0 : i32
    return %arg0, %c0_i32 : i32, i32
  }
  func.func @transform_1(%arg0: i32) -> (i32, i32) {
    %c0_i32 = arith.constant 0 : i32
    %c0_i32_0 = arith.constant 0 : i32
    %c0_i32_1 = arith.constant 0 : i32
    return %c0_i32, %c0_i32_0 : i32, i32
  }
  func.func @transform_2(%arg0: i32) -> (i32, i32) {
    %c0_i32 = arith.constant 0 : i32
    %c0_i32_0 = arith.constant 0 : i32
    %c0_i32_1 = arith.constant 0 : i32
    return %c0_i32, %c0_i32_0 : i32, i32
  }
  func.func @transform_3(%arg0: i32) -> (i32, i32) {
    %c0_i32 = arith.constant 0 : i32
    %c0_i32_0 = arith.constant 0 : i32
    %c0_i32_1 = arith.constant 0 : i32
    return %c0_i32, %c0_i32_0 : i32, i32
  }
  func.func @transform_4(%arg0: i32) -> (i32, i32) {
    %c0_i32 = arith.constant 0 : i32
    %c0_i32_0 = arith.constant 0 : i32
    %c0_i32_1 = arith.constant 0 : i32
    return %c0_i32, %c0_i32_0 : i32, i32
  }
  func.func @transform_5(%arg0: i32) -> (i32, i32) {
    %c0_i32 = arith.constant 0 : i32
    %c0_i32_0 = arith.constant 0 : i32
    %c0_i32_1 = arith.constant 0 : i32
    return %c0_i32, %c0_i32_0 : i32, i32
  }
  func.func @transform_6(%arg0: i32) -> i32 {
    %c0_i32 = arith.constant 0 : i32
    %c0_i32_0 = arith.constant 0 : i32
    return %c0_i32 : i32
  }
  func.func @transform_7(%arg0: i32) -> (i32, i32) {
    %c0_i32 = arith.constant 0 : i32
    %c0_i32_0 = arith.constant 0 : i32
    return %c0_i32, %arg0 : i32, i32
  }
}

</mosaic_0001>

<llo_original>
// kernel: ac_forward.1
$region0: #{ac_forward.1}
  #allocation0 [shape = 'u32[]', space=smem, size = 0x4, offset = 0x4, fixed_abs, tag = 'smem constant byte address 0x4 - core index']
  #allocation1 [shape = 'u32[144,128]{1,0:T(1,128)}', space=vmem, size = 0x12000, scoped, tag = 'internal scratch']
  #allocation2 [shape = 'f32[1]{0:T(128)S(6)}', space=smem, size = 0x200, scoped, tag = 'scoped memory for ac_forward.1']
  %s0 = inlined_call_operand.vmem [shape: f32[512,125], index: 0, kind: input, shape index: {}]
  %s1 = inlined_call_operand.vmem [shape: bf16[125,256], index: 1, kind: input, shape index: {}]
  %s2 = inlined_call_operand.vmem [shape: f32[1,256], index: 2, kind: input, shape index: {}]
  %s3 = inlined_call_operand.vmem [shape: bf16[256,128], index: 3, kind: input, shape index: {}]
  %s4 = inlined_call_operand.vmem [shape: f32[1,128], index: 4, kind: input, shape index: {}]
  %s5 = inlined_call_operand.vmem [shape: f32[1,128], index: 5, kind: input, shape index: {}]
  %s6 = inlined_call_operand.<no memory space> [shape: f32[1], index: 6, kind: input, shape index: {}]
  %s7 = inlined_call_operand.vmem [shape: f32[1,512], index: 7, kind: output, shape index: {}]
  %s8 = sld [smem:[#allocation0]]
  $region61: #{ac_forward.1} parent=0
    _
  %s10 = ssub.s32 1, %s8
  %s11 = scalar_select 0, %s10, %s8
  %12 = sst [smem:[#allocation2]] %s6
  loop: start=0, step=1, limit=4
  $region2: #{ac_forward.1} parent=0 // loop_pre_header
    _
  $region3: #{ac_forward.1} parent=0 // loop_header
    %s14 = sphi 0, %s18
    %p15 = scmp.ge.s32.totalorder %s14, 4
    %s24 = sphi 0, %s26
    %s27 = sphi 0, %s24
    %s28 = sphi 0, %s27
    %s44 = sphi 0, %s28
    %s48 = sphi 0, %s48
    %s50 = sphi 0, %s48
    %s51 = sphi 0, %s50
    %s65 = sphi 0, %s51
    %s69 = sphi 0, %s69
    %s71 = sphi 0, %s69
    %s72 = sphi 0, %s71
    %s86 = sphi 0, %s72
    %s90 = sphi 0, %s90
    %s92 = sphi 0, %s90
    %s93 = sphi 0, %s92
    %s107 = sphi 0, %s93
    %s111 = sphi 0, %s111
    %s113 = sphi 0, %s111
    %s114 = sphi 0, %s113
    %s128 = sphi 0, %s114
    %s132 = sphi 0, %s132
    %s134 = sphi 0, %s132
    %s135 = sphi 0, %s134
    %s149 = sphi 0, %s135
    %s153 = sphi 0, %s153
    %s155 = sphi 0, %s153
    %s156 = sphi 0, %s155
    %s170 = sphi 0, %s156
    %s176 = sphi 0, %s178
    %s179 = sphi 0, %s176
    %s180 = sphi 0, %s179
    %s196 = sphi 0, %s180
  $region4: #{ac_forward.1} parent=0 // loop_header_branch
    %17 = sbr.rel (%p15) target = $region8
  $region5: #{ac_forward.1} parent=0 // loop_body
    %s19 = ssub.s32 %s14, 1
    %s20 = ssub.s32 %s14, 2
    %s21 = sadd.s32 %s14, 1
    %s22 = ssub.s32 %s14, %s21
    %p23 = scmp.eq.s32.totalorder %s22, 0
    %s25 = sadd.s32 %s24, 1
    %s26 = scalar_select %p23, %s24, %s25
    %p29 = pneg %p23
    %p30 = scmp.eq.s32.totalorder %s14, 1
    %p31 = por %p29, %p30
    %p32 = scmp.ne.s32.totalorder %s24, %s27
    %p33 = scmp.eq.s32.totalorder %s14, 0
    %p34 = por %p32, %p33
    %p35 = scmp.ne.s32.totalorder %s24, %s27
    %p36 = scmp.eq.s32.totalorder %s19, 1
    %p37 = por %p35, %p36
    %p38 = scmp.ne.s32.totalorder %s27, %s28
    %p39 = scmp.eq.s32.totalorder %s19, 0
    %p40 = por %p38, %p39
    %p41 = scmp.ne.s32.totalorder %s27, %s28
    %p42 = scmp.eq.s32.totalorder %s20, 1
    %p43 = por %p41, %p42
    %p45 = scmp.ne.s32.totalorder %s28, %s44
    %p46 = scmp.eq.s32.totalorder %s20, 0
    %p47 = por %p45, %p46
    %s49 = sadd.s32 %s48, 1
    %p52 = scmp.eq.s32.totalorder %s14, 1
    %p53 = scmp.ne.s32.totalorder %s48, %s50
    %p54 = scmp.eq.s32.totalorder %s14, 0
    %p55 = por %p53, %p54
    %p56 = scmp.ne.s32.totalorder %s48, %s50
    %p57 = scmp.eq.s32.totalorder %s19, 1
    %p58 = por %p56, %p57
    %p59 = scmp.ne.s32.totalorder %s50, %s51
    %p60 = scmp.eq.s32.totalorder %s19, 0
    %p61 = por %p59, %p60
    %p62 = scmp.ne.s32.totalorder %s50, %s51
    %p63 = scmp.eq.s32.totalorder %s20, 1
    %p64 = por %p62, %p63
    %p66 = scmp.ne.s32.totalorder %s51, %s65
    %p67 = scmp.eq.s32.totalorder %s20, 0
    %p68 = por %p66, %p67
    %s70 = sadd.s32 %s69, 1
    %p73 = scmp.eq.s32.totalorder %s14, 1
    %p74 = scmp.ne.s32.totalorder %s69, %s71
    %p75 = scmp.eq.s32.totalorder %s14, 0
    %p76 = por %p74, %p75
    %p77 = scmp.ne.s32.totalorder %s69, %s71
    %p78 = scmp.eq.s32.totalorder %s19, 1
    %p79 = por %p77, %p78
    %p80 = scmp.ne.s32.totalorder %s71, %s72
    %p81 = scmp.eq.s32.totalorder %s19, 0
    %p82 = por %p80, %p81
    %p83 = scmp.ne.s32.totalorder %s71, %s72
    %p84 = scmp.eq.s32.totalorder %s20, 1
    %p85 = por %p83, %p84
    %p87 = scmp.ne.s32.totalorder %s72, %s86
    %p88 = scmp.eq.s32.totalorder %s20, 0
    %p89 = por %p87, %p88
    %s91 = sadd.s32 %s90, 1
    %p94 = scmp.eq.s32.totalorder %s14, 1
    %p95 = scmp.ne.s32.totalorder %s90, %s92
    %p96 = scmp.eq.s32.totalorder %s14, 0
    %p97 = por %p95, %p96
    %p98 = scmp.ne.s32.totalorder %s90, %s92
    %p99 = scmp.eq.s32.totalorder %s19, 1
    %p100 = por %p98, %p99
    %p101 = scmp.ne.s32.totalorder %s92, %s93
    %p102 = scmp.eq.s32.totalorder %s19, 0
    %p103 = por %p101, %p102
    %p104 = scmp.ne.s32.totalorder %s92, %s93
    %p105 = scmp.eq.s32.totalorder %s20, 1
    %p106 = por %p104, %p105
    %p108 = scmp.ne.s32.totalorder %s93, %s107
    %p109 = scmp.eq.s32.totalorder %s20, 0
    %p110 = por %p108, %p109
    %s112 = sadd.s32 %s111, 1
    %p115 = scmp.eq.s32.totalorder %s14, 1
    %p116 = scmp.ne.s32.totalorder %s111, %s113
    %p117 = scmp.eq.s32.totalorder %s14, 0
    %p118 = por %p116, %p117
    %p119 = scmp.ne.s32.totalorder %s111, %s113
    %p120 = scmp.eq.s32.totalorder %s19, 1
    %p121 = por %p119, %p120
    %p122 = scmp.ne.s32.totalorder %s113, %s114
    %p123 = scmp.eq.s32.totalorder %s19, 0
    %p124 = por %p122, %p123
    %p125 = scmp.ne.s32.totalorder %s113, %s114
    %p126 = scmp.eq.s32.totalorder %s20, 1
    %p127 = por %p125, %p126
    %p129 = scmp.ne.s32.totalorder %s114, %s128
    %p130 = scmp.eq.s32.totalorder %s20, 0
    %p131 = por %p129, %p130
    %s133 = sadd.s32 %s132, 1
    %p136 = scmp.eq.s32.totalorder %s14, 1
    %p137 = scmp.ne.s32.totalorder %s132, %s134
    %p138 = scmp.eq.s32.totalorder %s14, 0
    %p139 = por %p137, %p138
    %p140 = scmp.ne.s32.totalorder %s132, %s134
    %p141 = scmp.eq.s32.totalorder %s19, 1
    %p142 = por %p140, %p141
    %p143 = scmp.ne.s32.totalorder %s134, %s135
    %p144 = scmp.eq.s32.totalorder %s19, 0
    %p145 = por %p143, %p144
    %p146 = scmp.ne.s32.totalorder %s134, %s135
    %p147 = scmp.eq.s32.totalorder %s20, 1
    %p148 = por %p146, %p147
    %p150 = scmp.ne.s32.totalorder %s135, %s149
    %p151 = scmp.eq.s32.totalorder %s20, 0
    %p152 = por %p150, %p151
    %s154 = sadd.s32 %s153, 1
    %p157 = scmp.eq.s32.totalorder %s14, 1
    %p158 = scmp.ne.s32.totalorder %s153, %s155
    %p159 = scmp.eq.s32.totalorder %s14, 0
    %p160 = por %p158, %p159
    %p161 = scmp.ne.s32.totalorder %s153, %s155
    %p162 = scmp.eq.s32.totalorder %s19, 1
    %p163 = por %p161, %p162
    %p164 = scmp.ne.s32.totalorder %s155, %s156
    %p165 = scmp.eq.s32.totalorder %s19, 0
    %p166 = por %p164, %p165
    %p167 = scmp.ne.s32.totalorder %s155, %s156
    %p168 = scmp.eq.s32.totalorder %s20, 1
    %p169 = por %p167, %p168
    %p171 = scmp.ne.s32.totalorder %s156, %s170
    %p172 = scmp.eq.s32.totalorder %s20, 0
    %p173 = por %p171, %p172
    %s174 = ssub.s32 %s14, %s21
    %p175 = scmp.eq.s32.totalorder %s174, 0
    %s177 = sadd.s32 %s176, 1
    %s178 = scalar_select %p175, %s176, %s177
    %p181 = pneg %p175
    %p182 = scmp.eq.s32.totalorder %s14, 1
    %p183 = por %p181, %p182
    %p184 = scmp.ne.s32.totalorder %s176, %s179
    %p185 = scmp.eq.s32.totalorder %s14, 0
    %p186 = por %p184, %p185
    %p187 = scmp.ne.s32.totalorder %s176, %s179
    %p188 = scmp.eq.s32.totalorder %s19, 1
    %p189 = por %p187, %p188
    %p190 = scmp.ne.s32.totalorder %s179, %s180
    %p191 = scmp.eq.s32.totalorder %s19, 0
    %p192 = por %p190, %p191
    %p193 = scmp.ne.s32.totalorder %s179, %s180
    %p194 = scmp.eq.s32.totalorder %s20, 1
    %p195 = por %p193, %p194
    %p197 = scmp.ne.s32.totalorder %s180, %s196
    %p198 = scmp.eq.s32.totalorder %s20, 0
    %p199 = por %p197, %p198
    %p200 = scmp.le.s32.totalorder 1, %s14
    %p201 = scmp.lt.s32.totalorder %s14, 3
    %p202 = pnand %p200, %p201
    %p203 = pneg %p202
    // Predicated region
    $region9: #{ac_forward.1} parent=5 // pred_check
      _
    $region10: #{ac_forward.1} parent=5 // pred_check_branch
      %205 = sbr.rel (%p202) target = $region12
    $region11: #{ac_forward.1} parent=5 // pred_region
      %s206 = ssub.s32 %s14, 1
      // Predicated region
      $region13: #{ac_forward.1} parent=11 // pred_check
        %p207 = pneg %p61
      $region14: #{ac_forward.1} parent=11 // pred_check_branch
        %209 = sbr.rel (%p207) target = $region16
      $region15: #{ac_forward.1} parent=11 // pred_region
        _
      $region16: #{ac_forward.1} parent=11 // pred_fallthru
        _
      // Predicated region
      $region17: #{ac_forward.1} parent=11 // pred_check
        %p210 = pneg %p82
      $region18: #{ac_forward.1} parent=11 // pred_check_branch
        %212 = sbr.rel (%p210) target = $region20
      $region19: #{ac_forward.1} parent=11 // pred_region
        _
      $region20: #{ac_forward.1} parent=11 // pred_fallthru
        _
      // Predicated region
      $region21: #{ac_forward.1} parent=11 // pred_check
        %p213 = pneg %p103
      $region22: #{ac_forward.1} parent=11 // pred_check_branch
        %215 = sbr.rel (%p213) target = $region24
      $region23: #{ac_forward.1} parent=11 // pred_region
        _
      $region24: #{ac_forward.1} parent=11 // pred_fallthru
        _
      // Predicated region
      $region25: #{ac_forward.1} parent=11 // pred_check
        %p216 = pneg %p124
      $region26: #{ac_forward.1} parent=11 // pred_check_branch
        %218 = sbr.rel (%p216) target = $region28
      $region27: #{ac_forward.1} parent=11 // pred_region
        _
      $region28: #{ac_forward.1} parent=11 // pred_fallthru
        _
      // Predicated region
      $region29: #{ac_forward.1} parent=11 // pred_check
        %p219 = pneg %p145
      $region30: #{ac_forward.1} parent=11 // pred_check_branch
        %221 = sbr.rel (%p219) target = $region32
      $region31: #{ac_forward.1} parent=11 // pred_region
        _
      $region32: #{ac_forward.1} parent=11 // pred_fallthru
        _
      // Predicated region
      $region33: #{ac_forward.1} parent=11 // pred_check
        %p222 = pneg %p166
      $region34: #{ac_forward.1} parent=11 // pred_check_branch
        %224 = sbr.rel (%p222) target = $region36
      $region35: #{ac_forward.1} parent=11 // pred_region
        _
      $region36: #{ac_forward.1} parent=11 // pred_fallthru
        _
    $region12: #{ac_forward.1} parent=5 // pred_fallthru
      _
    %p225 = scmp.lt.s32.totalorder %s14, 2
    // Predicated region
    $region37: #{ac_forward.1} parent=5 // pred_check
      %p226 = pneg %p225
    $region38: #{ac_forward.1} parent=5 // pred_check_branch
      %228 = sbr.rel (%p226) target = $region40
    $region39: #{ac_forward.1} parent=5 // pred_region
      // Predicated region
      $region41: #{ac_forward.1} parent=39 // pred_check
        %p229 = pneg %p34
      $region42: #{ac_forward.1} parent=39 // pred_check_branch
        %231 = sbr.rel (%p229) target = $region44
      $region43: #{ac_forward.1} parent=39 // pred_region
        %s232 = smul.u32 32, %s14
        %p233 = scmp.lt.s32.totalorder %s232, 63
        %s234 = scalar_select %p233, %s232, 63
        %s235 = smul.addr %s234, 8
        %s236 = scalar_lea.vmem %s0, %s235
        %s237 = smul.u32 32, %s14
      $region44: #{ac_forward.1} parent=39 // pred_fallthru
        _
    $region40: #{ac_forward.1} parent=5 // pred_fallthru
      _
    %p238 = scmp.le.s32.totalorder 1, %s14
    %p239 = scmp.lt.s32.totalorder %s14, 3
    %p240 = pnand %p238, %p239
    %p241 = pneg %p240
    // Predicated region
    $region45: #{ac_forward.1} parent=5 // pred_check
      _
    $region46: #{ac_forward.1} parent=5 // pred_check_branch
      %243 = sbr.rel (%p240) target = $region48
    $region47: #{ac_forward.1} parent=5 // pred_region
      %s244 = ssub.s32 %s14, 1
      %s245 = smul.u32 32, %s19
      %p246 = scmp.lt.s32.totalorder %s245, 63
      %s247 = scalar_select %p246, %s245, 63
      %s248 = smul.addr %s247, 8
      %s249 = scalar_lea.vmem %s0, %s248
      %p250 = pneg %p40
      %p251 = pneg %p37
      %p252 = pneg %p61
      %p253 = pneg %p58
      %p254 = pneg %p82
      %p255 = pneg %p79
      %p256 = pneg %p103
      %p257 = pneg %p100
      %p258 = pneg %p124
      %p259 = pneg %p121
      %p260 = pneg %p145
      %p261 = pneg %p142
      %p262 = pneg %p166
      %p263 = pneg %p163
      %p264 = pneg %p192
      %p265 = pneg %p189
      %s266 = smul.u32 2, %s19
      %p267 = scmp.lt.s32.totalorder %s266, 3
      %s268 = scalar_select %p267, %s266, 3
      %s269 = scalar_lea.vmem %s7, %s268
      %s270 = smul.u32 32, %s19
      %p271 = scmp.lt.s32.totalorder %s270, 63
      %s272 = scalar_select %p271, %s270, 63
      %s273 = smul.addr %s272, 8
      %s274 = scalar_lea.vmem %s0, %s273
      %s275 = smul.u32 32, %s19
      %s276 = smul.u32 2, %s19
      %p277 = scmp.lt.s32.totalorder %s276, 3
      %s278 = scalar_select %p277, %s276, 3
      %s279 = scalar_lea.vmem %s7, %s278
      %s280 = smul.u32 2, %s19
      %v282 = vld [vmem:[%s274] sm:$0xff]
      %v283 = vld [vmem:[%s274 + $0x8] sm:$0xff]
      %v284 = vld [vmem:[%s274 + $0x10] sm:$0xff]
      %v285 = vld [vmem:[%s274 + $0x18] sm:$0xff]
      %v286 = vld [vmem:[%s274 + $0x20] sm:$0xff]
      %v287 = vld [vmem:[%s274 + $0x28] sm:$0xff]
      %v288 = vld [vmem:[%s274 + $0x30] sm:$0xff]
      %v289 = vld [vmem:[%s274 + $0x38] sm:$0xff]
      %v290 = vld [vmem:[%s274 + $0x40] sm:$0xff]
      %v291 = vld [vmem:[%s274 + $0x48] sm:$0xff]
      %v292 = vld [vmem:[%s274 + $0x50] sm:$0xff]
      %v293 = vld [vmem:[%s274 + $0x58] sm:$0xff]
      %v294 = vld [vmem:[%s274 + $0x60] sm:$0xff]
      %v295 = vld [vmem:[%s274 + $0x68] sm:$0xff]
      %v296 = vld [vmem:[%s274 + $0x70] sm:$0xff]
      %v297 = vld [vmem:[%s274 + $0x78] sm:$0xff]
      %v298 = vld [vmem:[%s274 + $0x80] sm:$0xff]
      %v299 = vld [vmem:[%s274 + $0x88] sm:$0xff]
      %v300 = vld [vmem:[%s274 + $0x90] sm:$0xff]
      %v301 = vld [vmem:[%s274 + $0x98] sm:$0xff]
      %v302 = vld [vmem:[%s274 + $0xa0] sm:$0xff]
      %v303 = vld [vmem:[%s274 + $0xa8] sm:$0xff]
      %v304 = vld [vmem:[%s274 + $0xb0] sm:$0xff]
      %v305 = vld [vmem:[%s274 + $0xb8] sm:$0xff]
      %v306 = vld [vmem:[%s274 + $0xc0] sm:$0xff]
      %v307 = vld [vmem:[%s274 + $0xc8] sm:$0xff]
      %v308 = vld [vmem:[%s274 + $0xd0] sm:$0xff]
      %v309 = vld [vmem:[%s274 + $0xd8] sm:$0xff]
      %v310 = vld [vmem:[%s274 + $0xe0] sm:$0xff]
      %v311 = vld [vmem:[%s274 + $0xe8] sm:$0xff]
      %v312 = vld [vmem:[%s274 + $0xf0] sm:$0xff]
      %v313 = vld [vmem:[%s274 + $0xf8] sm:$0xff]
      %v314 = vpack.c.bf16 %v283, %v282
      %v315 = vpack.c.bf16 %v285, %v284
      %v316 = vpack.c.bf16 %v287, %v286
      %v317 = vpack.c.bf16 %v289, %v288
      %v318 = vpack.c.bf16 %v291, %v290
      %v319 = vpack.c.bf16 %v293, %v292
      %v320 = vpack.c.bf16 %v295, %v294
      %v321 = vpack.c.bf16 %v297, %v296
      %v322 = vpack.c.bf16 %v299, %v298
      %v323 = vpack.c.bf16 %v301, %v300
      %v324 = vpack.c.bf16 %v303, %v302
      %v325 = vpack.c.bf16 %v305, %v304
      %v326 = vpack.c.bf16 %v307, %v306
      %v327 = vpack.c.bf16 %v309, %v308
      %v328 = vpack.c.bf16 %v311, %v310
      %v329 = vpack.c.bf16 %v313, %v312
      %v330 = vld [vmem:[%s1] sm:$0xff]
      %v331 = vld [vmem:[%s1 + $0x8] sm:$0xff]
      %v332 = vld [vmem:[%s1 + $0x10] sm:$0xff]
      %v333 = vld [vmem:[%s1 + $0x18] sm:$0xff]
      %v334 = vld [vmem:[%s1 + $0x20] sm:$0xff]
      %v335 = vld [vmem:[%s1 + $0x28] sm:$0xff]
      %v336 = vld [vmem:[%s1 + $0x30] sm:$0xff]
      %v337 = vld [vmem:[%s1 + $0x38] sm:$0xff]
      %v338 = vld [vmem:[%s1 + $0x40] sm:$0xff]
      %v339 = vld [vmem:[%s1 + $0x48] sm:$0xff]
      %v340 = vld [vmem:[%s1 + $0x50] sm:$0xff]
      %v341 = vld [vmem:[%s1 + $0x58] sm:$0xff]
      %v342 = vld [vmem:[%s1 + $0x60] sm:$0xff]
      %v343 = vld [vmem:[%s1 + $0x68] sm:$0xff]
      %v344 = vld [vmem:[%s1 + $0x70] sm:$0xff]
      %v345 = vld [vmem:[%s1 + $0x78] sm:$0x77]
      %v346 = vld [vmem:[%s2] sm:$0x3]
      %v348 = vlaneseq
      %v349 = vshrl.u32 %v348, 7
      %v350 = vsub.s32 0, %v349
      %v351 = vrot.slane %v346, %v350
      %v352 = vlaneseq
      %v353 = vshrl.u32 %v352, 7
      %v354 = vsub.s32 1, %v353
      %v355 = vrot.slane %v346, %v354
      %v374 = vunpack.c.l.b16 %v330
      %v375 = vunpack.c.h.b16 %v330
      %v376 = vunpack.c.l.b16 %v331
      %v377 = vunpack.c.h.b16 %v331
      %v378 = vunpack.c.l.b16 %v332
      %v379 = vunpack.c.h.b16 %v332
      %v380 = vunpack.c.l.b16 %v333
      %v381 = vunpack.c.h.b16 %v333
      %v382 = vunpack.c.l.b16 %v334
      %v383 = vunpack.c.h.b16 %v334
      %v384 = vunpack.c.l.b16 %v335
      %v385 = vunpack.c.h.b16 %v335
      %v386 = vunpack.c.l.b16 %v336
      %v387 = vunpack.c.h.b16 %v336
      %v388 = vunpack.c.l.b16 %v337
      %v389 = vunpack.c.h.b16 %v337
      %v390 = vunpack.c.l.b16 %v338
      %v391 = vunpack.c.h.b16 %v338
      %v392 = vunpack.c.l.b16 %v339
      %v393 = vunpack.c.h.b16 %v339
      %v394 = vunpack.c.l.b16 %v340
      %v395 = vunpack.c.h.b16 %v340
      %v396 = vunpack.c.l.b16 %v341
      %v397 = vunpack.c.h.b16 %v341
      %v398 = vunpack.c.l.b16 %v342
      %v399 = vunpack.c.h.b16 %v342
      %v400 = vunpack.c.l.b16 %v343
      %v401 = vunpack.c.h.b16 %v343
      %v402 = vunpack.c.l.b16 %v344
      %v403 = vunpack.c.h.b16 %v344
      %v404 = vunpack.c.l.b16 %v345
      %v405 = vunpack.c.h.b16 %v345
      %v406 = vpack.c.b16 %v376, %v374
      %v407 = vpack.c.b16 %v377, %v375
      %v408 = vpack.c.b16 %v380, %v378
      %v409 = vpack.c.b16 %v381, %v379
      %v410 = vpack.c.b16 %v384, %v382
      %v411 = vpack.c.b16 %v385, %v383
      %v412 = vpack.c.b16 %v388, %v386
      %v413 = vpack.c.b16 %v389, %v387
      %v414 = vpack.c.b16 %v392, %v390
      %v415 = vpack.c.b16 %v393, %v391
      %v416 = vpack.c.b16 %v396, %v394
      %v417 = vpack.c.b16 %v397, %v395
      %v418 = vpack.c.b16 %v400, %v398
      %v419 = vpack.c.b16 %v401, %v399
      %v420 = vpack.c.b16 %v404, %v402
      %v421 = vpack.c.b16 %v405, %v403
      %vm436 = vcmask 1022976
      %v438 = vsel %vm436, %v314, 0
      %v441 = vsel %vm436, %v315, 0
      %v444 = vsel %vm436, %v316, 0
      %v447 = vsel %vm436, %v317, 0
      %v450 = vsel %vm436, %v318, 0
      %v453 = vsel %vm436, %v319, 0
      %v456 = vsel %vm436, %v320, 0
      %v459 = vsel %vm436, %v321, 0
      %v462 = vsel %vm436, %v322, 0
      %v465 = vsel %vm436, %v323, 0
      %v468 = vsel %vm436, %v324, 0
      %v471 = vsel %vm436, %v325, 0
      %v474 = vsel %vm436, %v326, 0
      %v477 = vsel %vm436, %v327, 0
      %v480 = vsel %vm436, %v328, 0
      %v483 = vsel %vm436, %v329, 0
      %vm485 = vcmask 1045504
      %vm486 = vcmask 1046528
      %v487 = vsel %vm485, 4294967295, 65535
      %v488 = vsel %vm486, %v487, 0
      %v490 = vand.u32 %v420, %v488
      %v493 = vand.u32 %v421, %v488
      %495 = vmatprep.subr.bf16.mxu0 %v407
      %496 = vmatpush1.bf16.msra.mxu0 %v406
      %497 = vmatprep.subr.bf16.mxu0 %v409
      %498 = vmatpush1.bf16.msra.mxu0 %v408
      %499 = vmatprep.subr.bf16.mxu0 %v411
      %500 = vmatpush1.bf16.msra.mxu0 %v410
      %501 = vmatprep.subr.bf16.mxu0 %v413
      %502 = vmatpush1.bf16.msra.mxu0 %v412
      %503 = vmatprep.subr.bf16.mxu0 %v415
      %504 = vmatpush1.bf16.msra.mxu0 %v414
      %505 = vmatprep.subr.bf16.mxu0 %v417
      %506 = vmatpush1.bf16.msra.mxu0 %v416
      %507 = vmatprep.subr.bf16.mxu0 %v419
      %508 = vmatpush1.bf16.msra.mxu0 %v418
      %509 = vmatprep.subr.bf16.mxu0 %v493
      %510 = vmatpush1.bf16.msra.mxu0 %v490
      %511 = vmatprep.subr.bf16.mxu0 0
      %512 = vmatpush1.bf16.msra.mxu0 0
      %513 = vmatprep.subr.bf16.mxu0 0
      %514 = vmatpush1.bf16.msra.mxu0 0
      %515 = vmatprep.subr.bf16.mxu0 0
      %516 = vmatpush1.bf16.msra.mxu0 0
      %517 = vmatprep.subr.bf16.mxu0 0
      %518 = vmatpush1.bf16.msra.mxu0 0
      %519 = vmatprep.subr.bf16.mxu0 0
      %520 = vmatpush1.bf16.msra.mxu0 0
      %521 = vmatprep.subr.bf16.mxu0 0
      %522 = vmatpush1.bf16.msra.mxu0 0
      %523 = vmatprep.subr.bf16.mxu0 0
      %524 = vmatpush1.bf16.msra.mxu0 0
      %525 = vmatprep.subr.bf16.mxu0 0
      %526 = vmatpush1.bf16.msra.mxu0 0
      %527 = vmatprep.mubr.bf16.mxu0 0
      %528 = vmatmul.mubr.bf16.gmra.mrb[0].mxu0 %v438
      %v529 = vpop.f32.mrb[0].mxu0
      %v530 = vadd.f32 %v351, %v529
      %v531 = vpop.f32.mrb[0].mxu0
      %v532 = vadd.f32 %v355, %v531
      %v533 = vpop.f32.mrb[0].mxu0
      %v534 = vadd.f32 %v351, %v533
      %v535 = vpop.f32.mrb[0].mxu0
      %v536 = vadd.f32 %v355, %v535
      %537 = vmatprep.mubr.bf16.mxu0 0
      %538 = vmatmul.mubr.bf16.gmra.mrb[0].mxu0 %v441
      %v539 = vpop.f32.mrb[0].mxu0
      %v540 = vadd.f32 %v351, %v539
      %v541 = vpop.f32.mrb[0].mxu0
      %v542 = vadd.f32 %v355, %v541
      %v543 = vpop.f32.mrb[0].mxu0
      %v544 = vadd.f32 %v351, %v543
      %v545 = vpop.f32.mrb[0].mxu0
      %v546 = vadd.f32 %v355, %v545
      %547 = vmatprep.mubr.bf16.mxu0 0
      %548 = vmatmul.mubr.bf16.gmra.mrb[0].mxu0 %v444
      %v549 = vpop.f32.mrb[0].mxu0
      %v550 = vadd.f32 %v351, %v549
      %v551 = vpop.f32.mrb[0].mxu0
      %v552 = vadd.f32 %v355, %v551
      %v553 = vpop.f32.mrb[0].mxu0
      %v554 = vadd.f32 %v351, %v553
      %v555 = vpop.f32.mrb[0].mxu0
      %v556 = vadd.f32 %v355, %v555
      %557 = vmatprep.mubr.bf16.mxu0 0
      %558 = vmatmul.mubr.bf16.gmra.mrb[0].mxu0 %v447
      %v559 = vpop.f32.mrb[0].mxu0
      %v560 = vadd.f32 %v351, %v559
      %v561 = vpop.f32.mrb[0].mxu0
      %v562 = vadd.f32 %v355, %v561
      %v563 = vpop.f32.mrb[0].mxu0
      %v564 = vadd.f32 %v351, %v563
      %v565 = vpop.f32.mrb[0].mxu0
      %v566 = vadd.f32 %v355, %v565
      %567 = vmatprep.mubr.bf16.mxu0 0
      %568 = vmatmul.mubr.bf16.gmra.mrb[0].mxu0 %v450
      %v569 = vpop.f32.mrb[0].mxu0
      %v570 = vadd.f32 %v351, %v569
      %v571 = vpop.f32.mrb[0].mxu0
      %v572 = vadd.f32 %v355, %v571
      %v573 = vpop.f32.mrb[0].mxu0
      %v574 = vadd.f32 %v351, %v573
      %v575 = vpop.f32.mrb[0].mxu0
      %v576 = vadd.f32 %v355, %v575
      %577 = vmatprep.mubr.bf16.mxu0 0
      %578 = vmatmul.mubr.bf16.gmra.mrb[0].mxu0 %v453
      %v579 = vpop.f32.mrb[0].mxu0
      %v580 = vadd.f32 %v351, %v579
      %v581 = vpop.f32.mrb[0].mxu0
      %v582 = vadd.f32 %v355, %v581
      %v583 = vpop.f32.mrb[0].mxu0
      %v584 = vadd.f32 %v351, %v583
      %v585 = vpop.f32.mrb[0].mxu0
      %v586 = vadd.f32 %v355, %v585
      %587 = vmatprep.mubr.bf16.mxu0 0
      %588 = vmatmul.mubr.bf16.gmra.mrb[0].mxu0 %v456
      %v589 = vpop.f32.mrb[0].mxu0
      %v590 = vadd.f32 %v351, %v589
      %v591 = vpop.f32.mrb[0].mxu0
      %v592 = vadd.f32 %v355, %v591
      %v593 = vpop.f32.mrb[0].mxu0
      %v594 = vadd.f32 %v351, %v593
      %v595 = vpop.f32.mrb[0].mxu0
      %v596 = vadd.f32 %v355, %v595
      %597 = vmatprep.mubr.bf16.mxu0 0
      %598 = vmatmul.mubr.bf16.gmra.mrb[0].mxu0 %v459
      %v599 = vpop.f32.mrb[0].mxu0
      %v600 = vadd.f32 %v351, %v599
      %v601 = vpop.f32.mrb[0].mxu0
      %v602 = vadd.f32 %v355, %v601
      %v603 = vpop.f32.mrb[0].mxu0
      %v604 = vadd.f32 %v351, %v603
      %v605 = vpop.f32.mrb[0].mxu0
      %v606 = vadd.f32 %v355, %v605
      %607 = vmatprep.mubr.bf16.mxu0 0
      %608 = vmatmul.mubr.bf16.gmra.mrb[0].mxu0 %v462
      %v609 = vpop.f32.mrb[0].mxu0
      %v610 = vadd.f32 %v351, %v609
      %v611 = vpop.f32.mrb[0].mxu0
      %v612 = vadd.f32 %v355, %v611
      %v613 = vpop.f32.mrb[0].mxu0
      %v614 = vadd.f32 %v351, %v613
      %v615 = vpop.f32.mrb[0].mxu0
      %v616 = vadd.f32 %v355, %v615
      %617 = vmatprep.mubr.bf16.mxu0 0
      %618 = vmatmul.mubr.bf16.gmra.mrb[0].mxu0 %v465
      %v619 = vpop.f32.mrb[0].mxu0
      %v620 = vadd.f32 %v351, %v619
      %v621 = vpop.f32.mrb[0].mxu0
      %v622 = vadd.f32 %v355, %v621
      %v623 = vpop.f32.mrb[0].mxu0
      %v624 = vadd.f32 %v351, %v623
      %v625 = vpop.f32.mrb[0].mxu0
      %v626 = vadd.f32 %v355, %v625
      %627 = vmatprep.mubr.bf16.mxu0 0
      %628 = vmatmul.mubr.bf16.gmra.mrb[0].mxu0 %v468
      %v629 = vpop.f32.mrb[0].mxu0
      %v630 = vadd.f32 %v351, %v629
      %v631 = vpop.f32.mrb[0].mxu0
      %v632 = vadd.f32 %v355, %v631
      %v633 = vpop.f32.mrb[0].mxu0
      %v634 = vadd.f32 %v351, %v633
      %v635 = vpop.f32.mrb[0].mxu0
      %v636 = vadd.f32 %v355, %v635
      %637 = vmatprep.mubr.bf16.mxu0 0
      %638 = vmatmul.mubr.bf16.gmra.mrb[0].mxu0 %v471
      %v639 = vpop.f32.mrb[0].mxu0
      %v640 = vadd.f32 %v351, %v639
      %v641 = vpop.f32.mrb[0].mxu0
      %v642 = vadd.f32 %v355, %v641
      %v643 = vpop.f32.mrb[0].mxu0
      %v644 = vadd.f32 %v351, %v643
      %v645 = vpop.f32.mrb[0].mxu0
      %v646 = vadd.f32 %v355, %v645
      %647 = vmatprep.mubr.bf16.mxu0 0
      %648 = vmatmul.mubr.bf16.gmra.mrb[0].mxu0 %v474
      %v649 = vpop.f32.mrb[0].mxu0
      %v650 = vadd.f32 %v351, %v649
      %v651 = vpop.f32.mrb[0].mxu0
      %v652 = vadd.f32 %v355, %v651
      %v653 = vpop.f32.mrb[0].mxu0
      %v654 = vadd.f32 %v351, %v653
      %v655 = vpop.f32.mrb[0].mxu0
      %v656 = vadd.f32 %v355, %v655
      %657 = vmatprep.mubr.bf16.mxu0 0
      %658 = vmatmul.mubr.bf16.gmra.mrb[0].mxu0 %v477
      %v659 = vpop.f32.mrb[0].mxu0
      %v660 = vadd.f32 %v351, %v659
      %v661 = vpop.f32.mrb[0].mxu0
      %v662 = vadd.f32 %v355, %v661
      %v663 = vpop.f32.mrb[0].mxu0
      %v664 = vadd.f32 %v351, %v663
      %v665 = vpop.f32.mrb[0].mxu0
      %v666 = vadd.f32 %v355, %v665
      %667 = vmatprep.mubr.bf16.mxu0 0
      %668 = vmatmul.mubr.bf16.gmra.mrb[0].mxu0 %v480
      %v669 = vpop.f32.mrb[0].mxu0
      %v670 = vadd.f32 %v351, %v669
      %v671 = vpop.f32.mrb[0].mxu0
      %v672 = vadd.f32 %v355, %v671
      %v673 = vpop.f32.mrb[0].mxu0
      %v674 = vadd.f32 %v351, %v673
      %v675 = vpop.f32.mrb[0].mxu0
      %v676 = vadd.f32 %v355, %v675
      %677 = vmatprep.mubr.bf16.mxu0 0
      %678 = vmatmul.mubr.bf16.gmra.mrb[0].mxu0 %v483
      %v679 = vpop.f32.mrb[0].mxu0
      %v680 = vadd.f32 %v351, %v679
      %v681 = vpop.f32.mrb[0].mxu0
      %v682 = vadd.f32 %v355, %v681
      %v683 = vpop.f32.mrb[0].mxu0
      %v684 = vadd.f32 %v351, %v683
      %v685 = vpop.f32.mrb[0].mxu0
      %v686 = vadd.f32 %v355, %v685
      %687 = vdwg.mxu0
      %v688 = vmax.f32 %v530, 0.0
      %v689 = vmax.f32 %v532, 0.0
      %v690 = vmax.f32 %v534, 0.0
      %v691 = vmax.f32 %v536, 0.0
      %v692 = vmax.f32 %v540, 0.0
      %v693 = vmax.f32 %v542, 0.0
      %v694 = vmax.f32 %v544, 0.0
      %v695 = vmax.f32 %v546, 0.0
      %v696 = vmax.f32 %v550, 0.0
      %v697 = vmax.f32 %v552, 0.0
      %v698 = vmax.f32 %v554, 0.0
      %v699 = vmax.f32 %v556, 0.0
      %v700 = vmax.f32 %v560, 0.0
      %v701 = vmax.f32 %v562, 0.0
      %v702 = vmax.f32 %v564, 0.0
      %v703 = vmax.f32 %v566, 0.0
      %v704 = vmax.f32 %v570, 0.0
      %v705 = vmax.f32 %v572, 0.0
      %v706 = vmax.f32 %v574, 0.0
      %v707 = vmax.f32 %v576, 0.0
      %v708 = vmax.f32 %v580, 0.0
      %v709 = vmax.f32 %v582, 0.0
      %v710 = vmax.f32 %v584, 0.0
      %v711 = vmax.f32 %v586, 0.0
      %v712 = vmax.f32 %v590, 0.0
      %v713 = vmax.f32 %v592, 0.0
      %v714 = vmax.f32 %v594, 0.0
      %v715 = vmax.f32 %v596, 0.0
      %v716 = vmax.f32 %v600, 0.0
      %v717 = vmax.f32 %v602, 0.0
      %v718 = vmax.f32 %v604, 0.0
      %v719 = vmax.f32 %v606, 0.0
      %v720 = vmax.f32 %v610, 0.0
      %v721 = vmax.f32 %v612, 0.0
      %v722 = vmax.f32 %v614, 0.0
      %v723 = vmax.f32 %v616, 0.0
      %v724 = vmax.f32 %v620, 0.0
      %v725 = vmax.f32 %v622, 0.0
      %v726 = vmax.f32 %v624, 0.0
      %v727 = vmax.f32 %v626, 0.0
      %v728 = vmax.f32 %v630, 0.0
      %v729 = vmax.f32 %v632, 0.0
      %v730 = vmax.f32 %v634, 0.0
      %v731 = vmax.f32 %v636, 0.0
      %v732 = vmax.f32 %v640, 0.0
      %v733 = vmax.f32 %v642, 0.0
      %v734 = vmax.f32 %v644, 0.0
      %v735 = vmax.f32 %v646, 0.0
      %v736 = vmax.f32 %v650, 0.0
      %v737 = vmax.f32 %v652, 0.0
      %v738 = vmax.f32 %v654, 0.0
      %v739 = vmax.f32 %v656, 0.0
      %v740 = vmax.f32 %v660, 0.0
      %v741 = vmax.f32 %v662, 0.0
      %v742 = vmax.f32 %v664, 0.0
      %v743 = vmax.f32 %v666, 0.0
      %v744 = vmax.f32 %v670, 0.0
      %v745 = vmax.f32 %v672, 0.0
      %v746 = vmax.f32 %v674, 0.0
      %v747 = vmax.f32 %v676, 0.0
      %v748 = vmax.f32 %v680, 0.0
      %v749 = vmax.f32 %v682, 0.0
      %v750 = vmax.f32 %v684, 0.0
      %v751 = vmax.f32 %v686, 0.0
      %v752 = vpack.c.bf16 %v690, %v688
      %v753 = vpack.c.bf16 %v691, %v689
      %v754 = vpack.c.bf16 %v694, %v692
      %v755 = vpack.c.bf16 %v695, %v693
      %v756 = vpack.c.bf16 %v698, %v696
      %v757 = vpack.c.bf16 %v699, %v697
      %v758 = vpack.c.bf16 %v702, %v700
      %v759 = vpack.c.bf16 %v703, %v701
      %v760 = vpack.c.bf16 %v706, %v704
      %v761 = vpack.c.bf16 %v707, %v705
      %v762 = vpack.c.bf16 %v710, %v708
      %v763 = vpack.c.bf16 %v711, %v709
      %v764 = vpack.c.bf16 %v714, %v712
      %v765 = vpack.c.bf16 %v715, %v713
      %v766 = vpack.c.bf16 %v718, %v716
      %v767 = vpack.c.bf16 %v719, %v717
      %v768 = vpack.c.bf16 %v722, %v720
      %v769 = vpack.c.bf16 %v723, %v721
      %v770 = vpack.c.bf16 %v726, %v724
      %v771 = vpack.c.bf16 %v727, %v725
      %v772 = vpack.c.bf16 %v730, %v728
      %v773 = vpack.c.bf16 %v731, %v729
      %v774 = vpack.c.bf16 %v734, %v732
      %v775 = vpack.c.bf16 %v735, %v733
      %v776 = vpack.c.bf16 %v738, %v736
      %v777 = vpack.c.bf16 %v739, %v737
      %v778 = vpack.c.bf16 %v742, %v740
      %v779 = vpack.c.bf16 %v743, %v741
      %v780 = vpack.c.bf16 %v746, %v744
      %v781 = vpack.c.bf16 %v747, %v745
      %v782 = vpack.c.bf16 %v750, %v748
      %v783 = vpack.c.bf16 %v751, %v749
      %v784 = vld [vmem:[%s3] sm:$0xf]
      %v785 = vld [vmem:[%s3 + $0x4] sm:$0xf]
      %v786 = vld [vmem:[%s3 + $0x8] sm:$0xf]
      %v787 = vld [vmem:[%s3 + $0xc] sm:$0xf]
      %v788 = vld [vmem:[%s3 + $0x10] sm:$0xf]
      %v789 = vld [vmem:[%s3 + $0x14] sm:$0xf]
      %v790 = vld [vmem:[%s3 + $0x18] sm:$0xf]
      %v791 = vld [vmem:[%s3 + $0x1c] sm:$0xf]
      %v792 = vld [vmem:[%s3 + $0x20] sm:$0xf]
      %v793 = vld [vmem:[%s3 + $0x24] sm:$0xf]
      %v794 = vld [vmem:[%s3 + $0x28] sm:$0xf]
      %v795 = vld [vmem:[%s3 + $0x2c] sm:$0xf]
      %v796 = vld [vmem:[%s3 + $0x30] sm:$0xf]
      %v797 = vld [vmem:[%s3 + $0x34] sm:$0xf]
      %v798 = vld [vmem:[%s3 + $0x38] sm:$0xf]
      %v799 = vld [vmem:[%s3 + $0x3c] sm:$0xf]
      %v800 = vld [vmem:[%s3 + $0x40] sm:$0xf]
      %v801 = vld [vmem:[%s3 + $0x44] sm:$0xf]
      %v802 = vld [vmem:[%s3 + $0x48] sm:$0xf]
      %v803 = vld [vmem:[%s3 + $0x4c] sm:$0xf]
      %v804 = vld [vmem:[%s3 + $0x50] sm:$0xf]
      %v805 = vld [vmem:[%s3 + $0x54] sm:$0xf]
      %v806 = vld [vmem:[%s3 + $0x58] sm:$0xf]
      %v807 = vld [vmem:[%s3 + $0x5c] sm:$0xf]
      %v808 = vld [vmem:[%s3 + $0x60] sm:$0xf]
      %v809 = vld [vmem:[%s3 + $0x64] sm:$0xf]
      %v810 = vld [vmem:[%s3 + $0x68] sm:$0xf]
      %v811 = vld [vmem:[%s3 + $0x6c] sm:$0xf]
      %v812 = vld [vmem:[%s3 + $0x70] sm:$0xf]
      %v813 = vld [vmem:[%s3 + $0x74] sm:$0xf]
      %v814 = vld [vmem:[%s3 + $0x78] sm:$0xf]
      %v815 = vld [vmem:[%s3 + $0x7c] sm:$0xf]
      %v816 = vld [vmem:[%s4] sm:$0x1]
      %v818 = vlaneseq
      %v819 = vshrl.u32 %v818, 7
      %v820 = vsub.s32 0, %v819
      %v821 = vrot.slane %v816, %v820
      %v855 = vunpack.c.l.b16 %v784
      %v856 = vunpack.c.l.b16 %v785
      %v857 = vunpack.c.l.b16 %v786
      %v858 = vunpack.c.l.b16 %v787
      %v859 = vunpack.c.l.b16 %v788
      %v860 = vunpack.c.l.b16 %v789
      %v861 = vunpack.c.l.b16 %v790
      %v862 = vunpack.c.l.b16 %v791
      %v863 = vunpack.c.l.b16 %v792
      %v864 = vunpack.c.l.b16 %v793
      %v865 = vunpack.c.l.b16 %v794
      %v866 = vunpack.c.l.b16 %v795
      %v867 = vunpack.c.l.b16 %v796
      %v868 = vunpack.c.l.b16 %v797
      %v869 = vunpack.c.l.b16 %v798
      %v870 = vunpack.c.l.b16 %v799
      %v871 = vunpack.c.l.b16 %v800
      %v872 = vunpack.c.l.b16 %v801
      %v873 = vunpack.c.l.b16 %v802
      %v874 = vunpack.c.l.b16 %v803
      %v875 = vunpack.c.l.b16 %v804
      %v876 = vunpack.c.l.b16 %v805
      %v877 = vunpack.c.l.b16 %v806
      %v878 = vunpack.c.l.b16 %v807
      %v879 = vunpack.c.l.b16 %v808
      %v880 = vunpack.c.l.b16 %v809
      %v881 = vunpack.c.l.b16 %v810
      %v882 = vunpack.c.l.b16 %v811
      %v883 = vunpack.c.l.b16 %v812
      %v884 = vunpack.c.l.b16 %v813
      %v885 = vunpack.c.l.b16 %v814
      %v886 = vunpack.c.l.b16 %v815
      %v887 = vpack.c.b16 %v856, %v855
      %v888 = vpack.c.b16 %v858, %v857
      %v889 = vpack.c.b16 %v860, %v859
      %v890 = vpack.c.b16 %v862, %v861
      %v891 = vpack.c.b16 %v864, %v863
      %v892 = vpack.c.b16 %v866, %v865
      %v893 = vpack.c.b16 %v868, %v867
      %v894 = vpack.c.b16 %v870, %v869
      %v895 = vpack.c.b16 %v872, %v871
      %v896 = vpack.c.b16 %v874, %v873
      %v897 = vpack.c.b16 %v876, %v875
      %v898 = vpack.c.b16 %v878, %v877
      %v899 = vpack.c.b16 %v880, %v879
      %v900 = vpack.c.b16 %v882, %v881
      %v901 = vpack.c.b16 %v884, %v883
      %v902 = vpack.c.b16 %v886, %v885
      %919 = vmatprep.subr.bf16.mxu0 0
      %920 = vmatpush1.bf16.msra.mxu0 %v887
      %921 = vmatprep.subr.bf16.mxu0 0
      %922 = vmatpush1.bf16.msra.mxu0 %v888
      %923 = vmatprep.subr.bf16.mxu0 0
      %924 = vmatpush1.bf16.msra.mxu0 %v889
      %925 = vmatprep.subr.bf16.mxu0 0
      %926 = vmatpush1.bf16.msra.mxu0 %v890
      %927 = vmatprep.subr.bf16.mxu0 0
      %928 = vmatpush1.bf16.msra.mxu0 %v891
      %929 = vmatprep.subr.bf16.mxu0 0
      %930 = vmatpush1.bf16.msra.mxu0 %v892
      %931 = vmatprep.subr.bf16.mxu0 0
      %932 = vmatpush1.bf16.msra.mxu0 %v893
      %933 = vmatprep.subr.bf16.mxu0 0
      %934 = vmatpush1.bf16.msra.mxu0 %v894
      %935 = vmatprep.subr.bf16.mxu0 0
      %936 = vmatpush1.bf16.msra.mxu0 %v895
      %937 = vmatprep.subr.bf16.mxu0 0
      %938 = vmatpush1.bf16.msra.mxu0 %v896
      %939 = vmatprep.subr.bf16.mxu0 0
      %940 = vmatpush1.bf16.msra.mxu0 %v897
      %941 = vmatprep.subr.bf16.mxu0 0
      %942 = vmatpush1.bf16.msra.mxu0 %v898
      %943 = vmatprep.subr.bf16.mxu0 0
      %944 = vmatpush1.bf16.msra.mxu0 %v899
      %945 = vmatprep.subr.bf16.mxu0 0
      %946 = vmatpush1.bf16.msra.mxu0 %v900
      %947 = vmatprep.subr.bf16.mxu0 0
      %948 = vmatpush1.bf16.msra.mxu0 %v901
      %949 = vmatprep.subr.bf16.mxu0 0
      %950 = vmatpush1.bf16.msra.mxu0 %v902
      %951 = vmatprep.mubr.bf16.mxu0 %v753
      %952 = vmatmul.mubr.bf16.gmra.mrb[0].mxu0 %v752
      %v953 = vpop.f32.mrb[0].mxu0
      %v954 = vadd.f32 %v821, %v953
      %v955 = vpop.f32.mrb[0].mxu0
      %v956 = vpop.f32.mrb[0].mxu0
      %v957 = vadd.f32 %v821, %v956
      %v958 = vpop.f32.mrb[0].mxu0
      %959 = vmatprep.mubr.bf16.mxu0 %v755
      %960 = vmatmul.mubr.bf16.gmra.mrb[0].mxu0 %v754
      %v961 = vpop.f32.mrb[0].mxu0
      %v962 = vadd.f32 %v821, %v961
      %v963 = vpop.f32.mrb[0].mxu0
      %v964 = vpop.f32.mrb[0].mxu0
      %v965 = vadd.f32 %v821, %v964
      %v966 = vpop.f32.mrb[0].mxu0
      %967 = vmatprep.mubr.bf16.mxu0 %v757
      %968 = vmatmul.mubr.bf16.gmra.mrb[0].mxu0 %v756
      %v969 = vpop.f32.mrb[0].mxu0
      %v970 = vadd.f32 %v821, %v969
      %v971 = vpop.f32.mrb[0].mxu0
      %v972 = vpop.f32.mrb[0].mxu0
      %v973 = vadd.f32 %v821, %v972
      %v974 = vpop.f32.mrb[0].mxu0
      %975 = vmatprep.mubr.bf16.mxu0 %v759
      %976 = vmatmul.mubr.bf16.gmra.mrb[0].mxu0 %v758
      %v977 = vpop.f32.mrb[0].mxu0
      %v978 = vadd.f32 %v821, %v977
      %v979 = vpop.f32.mrb[0].mxu0
      %v980 = vpop.f32.mrb[0].mxu0
      %v981 = vadd.f32 %v821, %v980
      %v982 = vpop.f32.mrb[0].mxu0
      %983 = vmatprep.mubr.bf16.mxu0 %v761
      %984 = vmatmul.mubr.bf16.gmra.mrb[0].mxu0 %v760
      %v985 = vpop.f32.mrb[0].mxu0
      %v986 = vadd.f32 %v821, %v985
      %v987 = vpop.f32.mrb[0].mxu0
      %v988 = vpop.f32.mrb[0].mxu0
      %v989 = vadd.f32 %v821, %v988
      %v990 = vpop.f32.mrb[0].mxu0
      %991 = vmatprep.mubr.bf16.mxu0 %v763
      %992 = vmatmul.mubr.bf16.gmra.mrb[0].mxu0 %v762
      %v993 = vpop.f32.mrb[0].mxu0
      %v994 = vadd.f32 %v821, %v993
      %v995 = vpop.f32.mrb[0].mxu0
      %v996 = vpop.f32.mrb[0].mxu0
      %v997 = vadd.f32 %v821, %v996
      %v998 = vpop.f32.mrb[0].mxu0
      %999 = vmatprep.mubr.bf16.mxu0 %v765
      %1000 = vmatmul.mubr.bf16.gmra.mrb[0].mxu0 %v764
      %v1001 = vpop.f32.mrb[0].mxu0
      %v1002 = vadd.f32 %v821, %v1001
      %v1003 = vpop.f32.mrb[0].mxu0
      %v1004 = vpop.f32.mrb[0].mxu0
      %v1005 = vadd.f32 %v821, %v1004
      %v1006 = vpop.f32.mrb[0].mxu0
      %1007 = vmatprep.mubr.bf16.mxu0 %v767
      %1008 = vmatmul.mubr.bf16.gmra.mrb[0].mxu0 %v766
      %v1009 = vpop.f32.mrb[0].mxu0
      %v1010 = vadd.f32 %v821, %v1009
      %v1011 = vpop.f32.mrb[0].mxu0
      %v1012 = vpop.f32.mrb[0].mxu0
      %v1013 = vadd.f32 %v821, %v1012
      %v1014 = vpop.f32.mrb[0].mxu0
      %1015 = vmatprep.mubr.bf16.mxu0 %v769
      %1016 = vmatmul.mubr.bf16.gmra.mrb[0].mxu0 %v768
      %v1017 = vpop.f32.mrb[0].mxu0
      %v1018 = vadd.f32 %v821, %v1017
      %v1019 = vpop.f32.mrb[0].mxu0
      %v1020 = vpop.f32.mrb[0].mxu0
      %v1021 = vadd.f32 %v821, %v1020
      %v1022 = vpop.f32.mrb[0].mxu0
      %1023 = vmatprep.mubr.bf16.mxu0 %v771
      %1024 = vmatmul.mubr.bf16.gmra.mrb[0].mxu0 %v770
      %v1025 = vpop.f32.mrb[0].mxu0
      %v1026 = vadd.f32 %v821, %v1025
      %v1027 = vpop.f32.mrb[0].mxu0
      %v1028 = vpop.f32.mrb[0].mxu0
      %v1029 = vadd.f32 %v821, %v1028
      %v1030 = vpop.f32.mrb[0].mxu0
      %1031 = vmatprep.mubr.bf16.mxu0 %v773
      %1032 = vmatmul.mubr.bf16.gmra.mrb[0].mxu0 %v772
      %v1033 = vpop.f32.mrb[0].mxu0
      %v1034 = vadd.f32 %v821, %v1033
      %v1035 = vpop.f32.mrb[0].mxu0
      %v1036 = vpop.f32.mrb[0].mxu0
      %v1037 = vadd.f32 %v821, %v1036
      %v1038 = vpop.f32.mrb[0].mxu0
      %1039 = vmatprep.mubr.bf16.mxu0 %v775
      %1040 = vmatmul.mubr.bf16.gmra.mrb[0].mxu0 %v774
      %v1041 = vpop.f32.mrb[0].mxu0
      %v1042 = vadd.f32 %v821, %v1041
      %v1043 = vpop.f32.mrb[0].mxu0
      %v1044 = vpop.f32.mrb[0].mxu0
      %v1045 = vadd.f32 %v821, %v1044
      %v1046 = vpop.f32.mrb[0].mxu0
      %1047 = vmatprep.mubr.bf16.mxu0 %v777
      %1048 = vmatmul.mubr.bf16.gmra.mrb[0].mxu0 %v776
      %v1049 = vpop.f32.mrb[0].mxu0
      %v1050 = vadd.f32 %v821, %v1049
      %v1051 = vpop.f32.mrb[0].mxu0
      %v1052 = vpop.f32.mrb[0].mxu0
      %v1053 = vadd.f32 %v821, %v1052
      %v1054 = vpop.f32.mrb[0].mxu0
      %1055 = vmatprep.mubr.bf16.mxu0 %v779
      %1056 = vmatmul.mubr.bf16.gmra.mrb[0].mxu0 %v778
      %v1057 = vpop.f32.mrb[0].mxu0
      %v1058 = vadd.f32 %v821, %v1057
      %v1059 = vpop.f32.mrb[0].mxu0
      %v1060 = vpop.f32.mrb[0].mxu0
      %v1061 = vadd.f32 %v821, %v1060
      %v1062 = vpop.f32.mrb[0].mxu0
      %1063 = vmatprep.mubr.bf16.mxu0 %v781
      %1064 = vmatmul.mubr.bf16.gmra.mrb[0].mxu0 %v780
      %v1065 = vpop.f32.mrb[0].mxu0
      %v1066 = vadd.f32 %v821, %v1065
      %v1067 = vpop.f32.mrb[0].mxu0
      %v1068 = vpop.f32.mrb[0].mxu0
      %v1069 = vadd.f32 %v821, %v1068
      %v1070 = vpop.f32.mrb[0].mxu0
      %1071 = vmatprep.mubr.bf16.mxu0 %v783
      %1072 = vmatmul.mubr.bf16.gmra.mrb[0].mxu0 %v782
      %v1073 = vpop.f32.mrb[0].mxu0
      %v1074 = vadd.f32 %v821, %v1073
      %v1075 = vpop.f32.mrb[0].mxu0
      %v1076 = vpop.f32.mrb[0].mxu0
      %v1077 = vadd.f32 %v821, %v1076
      %v1078 = vpop.f32.mrb[0].mxu0
      %1079 = vdwg.mxu0
      %v1080 = vmax.f32 %v954, 0.0
      %v1081 = vmax.f32 %v957, 0.0
      %v1082 = vmax.f32 %v962, 0.0
      %v1083 = vmax.f32 %v965, 0.0
      %v1084 = vmax.f32 %v970, 0.0
      %v1085 = vmax.f32 %v973, 0.0
      %v1086 = vmax.f32 %v978, 0.0
      %v1087 = vmax.f32 %v981, 0.0
      %v1088 = vmax.f32 %v986, 0.0
      %v1089 = vmax.f32 %v989, 0.0
      %v1090 = vmax.f32 %v994, 0.0
      %v1091 = vmax.f32 %v997, 0.0
      %v1092 = vmax.f32 %v1002, 0.0
      %v1093 = vmax.f32 %v1005, 0.0
      %v1094 = vmax.f32 %v1010, 0.0
      %v1095 = vmax.f32 %v1013, 0.0
      %v1096 = vmax.f32 %v1018, 0.0
      %v1097 = vmax.f32 %v1021, 0.0
      %v1098 = vmax.f32 %v1026, 0.0
      %v1099 = vmax.f32 %v1029, 0.0
      %v1100 = vmax.f32 %v1034, 0.0
      %v1101 = vmax.f32 %v1037, 0.0
      %v1102 = vmax.f32 %v1042, 0.0
      %v1103 = vmax.f32 %v1045, 0.0
      %v1104 = vmax.f32 %v1050, 0.0
      %v1105 = vmax.f32 %v1053, 0.0
      %v1106 = vmax.f32 %v1058, 0.0
      %v1107 = vmax.f32 %v1061, 0.0
      %v1108 = vmax.f32 %v1066, 0.0
      %v1109 = vmax.f32 %v1069, 0.0
      %v1110 = vmax.f32 %v1074, 0.0
      %v1111 = vmax.f32 %v1077, 0.0
      %v1112 = vld [vmem:[%s5] sm:$0x1]
      %s1113 = sld [smem:[#allocation2]]
      %v1114 = vstv %s1113
      %1115 = vmatprep.subr.mxu0 0.0
      %1116 = vmatpush1.xpose.msra.mxu0 %v1080
      %1117 = vmatprep.subr.mxu0 0.0
      %1118 = vmatpush1.xpose.msra.mxu0 %v1081
      %1119 = vmatprep.subr.mxu0 0.0
      %1120 = vmatpush1.xpose.msra.mxu0 %v1082
      %1121 = vmatprep.subr.mxu0 0.0
      %1122 = vmatpush1.xpose.msra.mxu0 %v1083
      %1123 = vmatprep.subr.mxu0 0.0
      %1124 = vmatpush1.xpose.msra.mxu0 %v1084
      %1125 = vmatprep.subr.mxu0 0.0
      %1126 = vmatpush1.xpose.msra.mxu0 %v1085
      %1127 = vmatprep.subr.mxu0 0.0
      %1128 = vmatpush1.xpose.msra.mxu0 %v1086
      %1129 = vmatprep.subr.mxu0 0.0
      %1130 = vmatpush1.xpose.msra.mxu0 %v1087
      %1131 = vmatprep.subr.mxu0 0.0
      %1132 = vmatpush1.xpose.msra.mxu0 %v1088
      %1133 = vmatprep.subr.mxu0 0.0
      %1134 = vmatpush1.xpose.msra.mxu0 %v1089
      %1135 = vmatprep.subr.mxu0 0.0
      %1136 = vmatpush1.xpose.msra.mxu0 %v1090
      %1137 = vmatprep.subr.mxu0 0.0
      %1138 = vmatpush1.xpose.msra.mxu0 %v1091
      %1139 = vmatprep.subr.mxu0 0.0
      %1140 = vmatpush1.xpose.msra.mxu0 %v1092
      %1141 = vmatprep.subr.mxu0 0.0
      %1142 = vmatpush1.xpose.msra.mxu0 %v1093
      %1143 = vmatprep.subr.mxu0 0.0
      %1144 = vmatpush1.xpose.msra.mxu0 %v1094
      %1145 = vmatprep.subr.mxu0 0.0
      %1146 = vmatpush1.xpose.msra.mxu0 %v1095
      %1147 = vmatprep.subr.mxu0 0.0
      %1148 = vmatpush1.xpose.msra.mxu0 %v1096
      %1149 = vmatprep.subr.mxu0 0.0
      %1150 = vmatpush1.xpose.msra.mxu0 %v1097
      %1151 = vmatprep.subr.mxu0 0.0
      %1152 = vmatpush1.xpose.msra.mxu0 %v1098
      %1153 = vmatprep.subr.mxu0 0.0
      %1154 = vmatpush1.xpose.msra.mxu0 %v1099
      %1155 = vmatprep.subr.mxu0 0.0
      %1156 = vmatpush1.xpose.msra.mxu0 %v1100
      %1157 = vmatprep.subr.mxu0 0.0
      %1158 = vmatpush1.xpose.msra.mxu0 %v1101
      %1159 = vmatprep.subr.mxu0 0.0
      %1160 = vmatpush1.xpose.msra.mxu0 %v1102
      %1161 = vmatprep.subr.mxu0 0.0
      %1162 = vmatpush1.xpose.msra.mxu0 %v1103
      %1163 = vmatprep.subr.mxu0 0.0
      %1164 = vmatpush1.xpose.msra.mxu0 %v1104
      %1165 = vmatprep.subr.mxu0 0.0
      %1166 = vmatpush1.xpose.msra.mxu0 %v1105
      %1167 = vmatprep.subr.mxu0 0.0
      %1168 = vmatpush1.xpose.msra.mxu0 %v1106
      %1169 = vmatprep.subr.mxu0 0.0
      %1170 = vmatpush1.xpose.msra.mxu0 %v1107
      %1171 = vmatprep.subr.mxu0 0.0
      %1172 = vmatpush1.xpose.msra.mxu0 %v1108
      %1173 = vmatprep.subr.mxu0 0.0
      %1174 = vmatpush1.xpose.msra.mxu0 %v1109
      %1175 = vmatprep.subr.mxu0 0.0
      %1176 = vmatpush1.xpose.msra.mxu0 %v1110
      %1177 = vmatprep.subr.mxu0 0.0
      %1178 = vmatpush1.xpose.msra.mxu0 %v1111
      %1179 = vmatprep.mubr.f32.mxu0 0.0
      %1180 = vmatmul.mubr.f32.gmra.mrb[0].mxu0 %v1112
      %v1181 = vpop.f32.mrb[0].mxu0
      %v1182 = vadd.f32 %v1114, %v1181
      %v1183 = vpop.f32.mrb[0].mxu0
      %v1184 = vadd.f32 %v1114, %v1183
      %1185 = vdwg.mxu0
      %v1186 = vxor.u32 %v1182, 2147483648
      %v1187 = vxor.u32 %v1184, 2147483648
      %v1188 = vmul.f32 %v1186, 1.442695
      %v1189 = vpow.pop %v1188
      %v1190 = vmul.f32 %v1187, 1.442695
      %v1191 = vpow.pop %v1190
      %v1192 = vadd.f32 %v1189, 1.0
      %v1193 = vadd.f32 %v1191, 1.0
      %v1194 = vrcp.pop %v1192
      %v1195 = vmul.f32 1.0, %v1194
      %v1196 = vrcp.pop %v1193
      %v1197 = vmul.f32 1.0, %v1196
      %v1200 = vcombine.low %v1195, %v1197
      %v1202 = vunpack.c.l.s4 1966171168
      %v1203 = vunpack.c.0.s8 %v1202
      %v1204 = vlaneseq
      %v1205 = vshrl.u32 %v1204, 7
      %v1206 = vsub.s32 %v1203, %v1205
      %v1207 = vrot.slane %v1200, %v1206
      %v1209 = vunpack.c.l.s4 1966171168
      %v1210 = vunpack.c.0.s8 %v1209
      %v1211 = vlaneseq
      %v1212 = vshrl.u32 %v1211, 7
      %v1213 = vsub.s32 %v1210, %v1212
      %v1214 = vrot.slane %v1207, %v1213
      %v1216 = vlaneseq
      %vm1217 = vcmp.ge.s32.totalorder %v1216, 0
      %vm1218 = vcmp.lt.s32.totalorder %v1216, 256
      %vm1219 = vmand %vm1217, %vm1218
      %1220 = vst.msk [vmem:[%s279] sm:$0x3] %vm1219, %v1214
      %s1221 = smul.u32 2, %s19
      %p1222 = scmp.lt.s32.totalorder %s1221, 3
      %s1223 = scalar_select %p1222, %s1221, 3
      %s1224 = scalar_lea.vmem %s7, %s1223
      // Predicated region
      $region49: #{ac_forward.1} parent=47 // pred_check
        %p1225 = pneg %p189
      $region50: #{ac_forward.1} parent=47 // pred_check_branch
        %1227 = sbr.rel (%p1225) target = $region52
      $region51: #{ac_forward.1} parent=47 // pred_region
        %s1228 = smul.u32 2, %s19
      $region52: #{ac_forward.1} parent=47 // pred_fallthru
        _
    $region48: #{ac_forward.1} parent=5 // pred_fallthru
      _
    %p1229 = scmp.le.s32.totalorder 2, %s14
    // Predicated region
    $region53: #{ac_forward.1} parent=5 // pred_check
      %p1230 = pneg %p1229
    $region54: #{ac_forward.1} parent=5 // pred_check_branch
      %1232 = sbr.rel (%p1230) target = $region56
    $region55: #{ac_forward.1} parent=5 // pred_region
      %s1233 = ssub.s32 %s14, 2
      // Predicated region
      $region57: #{ac_forward.1} parent=55 // pred_check
        %p1234 = pneg %p195
      $region58: #{ac_forward.1} parent=55 // pred_check_branch
        %1236 = sbr.rel (%p1234) target = $region60
      $region59: #{ac_forward.1} parent=55 // pred_region
        %s1237 = smul.u32 2, %s20
        %p1238 = scmp.lt.s32.totalorder %s1237, 3
        %s1239 = scalar_select %p1238, %s1237, 3
        %s1240 = scalar_lea.vmem %s7, %s1239
      $region60: #{ac_forward.1} parent=55 // pred_fallthru
        _
    $region56: #{ac_forward.1} parent=5 // pred_fallthru
      _
  $region6: #{ac_forward.1} parent=0 // loop_footer
    %s18 = sadd.s32 1, %s14
  $region7: #{ac_forward.1} parent=0 // loop_footer_branch
    %13 = sbr.rel target = $region3
  $region8: #{ac_forward.1} parent=0 // loop_exit
    _

</llo_original>
